<compile_context>
chip_gen: v7x
topology: tpu7x:2x2x1
jax: 0.10.0
libtpu: 0.0.40
codegen_flags: <defaults>
</compile_context>

<pallas_src>
import functools
import math

import jax
import jax.numpy as jnp
from jax import lax
from jax.experimental import pallas as pl
from jax.experimental.pallas import tpu as pltpu


def _round_up(a, m):
    return (a + m - 1) // m * m


def _pool_kernel(x_ref, out_ref, acc_ref, *, hw_true, thw, n_hw, needs_mask):
    """Streaming masked global-sum over the lane (spatial) axis.

    x_ref:   (rt, thw) chunk of the flattened (rows, HW) activation.
    out_ref: (1, rt, 1) per-row partial sums for this (split, row-block).
    acc_ref: (rt, acc_w) f32 running partial sums (acc_w = min(128, thw)).
    """
    s = pl.program_id(1)
    k = pl.program_id(2)

    @pl.when(k == 0)
    def _():
        acc_ref[...] = jnp.zeros_like(acc_ref)

    rows, acc_w = acc_ref.shape
    n_slices = thw // acc_w                      # exact by wrapper construction

    if needs_mask:
        chunk_start = (s * n_hw + k) * thw       # global column of lane 0
        lane = lax.broadcasted_iota(jnp.int32, (1, acc_w), 1)

    # A few independent vreg partial accumulators (breaks the serial add chain);
    # lane slices are loaded one at a time straight from the ref so neither the
    # chunk nor the accumulator is ever materialized as one big value.
    n_par = max(1, min(4, n_slices))
    partials = [jnp.zeros((rows, acc_w), jnp.float32) for _ in range(n_par)]
    for j in range(n_slices):
        xs = x_ref[:, j * acc_w:(j + 1) * acc_w].astype(jnp.float32)
        if needs_mask:
            xs = jnp.where(lane + (chunk_start + j * acc_w) < hw_true, xs, 0.0)
        partials[j % n_par] = partials[j % n_par] + xs

    total = partials[0]
    for p in partials[1:]:
        total = total + p

    # One accumulator read-modify-write per chunk.
    acc_ref[...] = acc_ref[...] + total

    @pl.when(k == n_hw - 1)
    def _():
        out_ref[...] = jnp.sum(acc_ref[...], axis=-1,
                               keepdims=True)[None].astype(out_ref.dtype)


def init_attention_params(key, in_planes, out_planes, kernel_size,
                          reduction=0.0625, kernel_num=4, min_channel=16):
    """Deterministic synthetic init mirroring the PyTorch _initialize_weights()."""
    a = max(int(in_planes * reduction), min_channel)
    ks = {}
    keys = jax.random.split(key, 5)

    def kaiming(k, out_c, in_c):
        # kaiming_normal_(mode='fan_out', nonlinearity='relu'); 1x1 conv -> fan_out = out_c
        std = math.sqrt(2.0 / out_c)
        return (std * jax.random.normal(k, (out_c, in_c))).astype(jnp.float32)

    ks["fc_w"] = kaiming(keys[0], a, in_planes)                 # (A, C_in), no bias
    ks["bn_gamma"] = jnp.ones((a,), jnp.float32)
    ks["bn_beta"] = jnp.zeros((a,), jnp.float32)
    ks["bn_mean"] = jnp.zeros((a,), jnp.float32)
    ks["bn_var"] = jnp.ones((a,), jnp.float32)
    ks["channel_w"] = kaiming(keys[1], in_planes, a)            # (C_in, A)
    ks["channel_b"] = jnp.zeros((in_planes,), jnp.float32)
    ks["filter_w"] = kaiming(keys[2], out_planes, a)            # (C_out, A)
    ks["filter_b"] = jnp.zeros((out_planes,), jnp.float32)
    ks["spatial_w"] = kaiming(keys[3], kernel_size * kernel_size, a)
    ks["spatial_b"] = jnp.zeros((kernel_size * kernel_size,), jnp.float32)
    ks["kernel_w"] = kaiming(keys[4], kernel_num, a)            # (Kn, A)
    ks["kernel_b"] = jnp.zeros((kernel_num,), jnp.float32)
    ks["attention_channel"] = a
    return ks


def prepare_attention_kernel_params(params, eps=1e-5):
    """One-time parameter prep: fold BN (running stats) into fc, fuse the heads."""
    scale = params["bn_gamma"] / jnp.sqrt(params["bn_var"] + eps)          # (A,)
    fc_w = (params["fc_w"] * scale[:, None]).T.astype(jnp.float32)         # (C_in, A)
    fc_b = (params["bn_beta"] - params["bn_mean"] * scale)[None, :]        # (1, A)
    head_w = jnp.concatenate(
        [params["channel_w"], params["filter_w"],
         params["spatial_w"], params["kernel_w"]], axis=0).T               # (A, TOT)
    head_b = jnp.concatenate(
        [params["channel_b"], params["filter_b"],
         params["spatial_b"], params["kernel_b"]], axis=0)[None, :]        # (1, TOT)
    return dict(fc_w=fc_w,
                fc_b=fc_b.astype(jnp.float32),
                head_w=head_w.astype(jnp.float32),
                head_b=head_b.astype(jnp.float32))


def odconv_attention(x, prep, in_planes, out_planes, kernel_size, kernel_num):
    B, C, H, W = x.shape
    assert C == in_planes
    HW = H * W
    R = B * C
    itemsize = jnp.dtype(x.dtype).itemsize

    # ---- generation-aware VMEM budgets (conservative default = v7x-safe) ----
    try:
        kind = jax.devices()[0].device_kind.lower()
    except Exception:
        kind = ""
    is_v7 = "v7" in kind
    if ("v5" in kind) or ("v6" in kind):
        x_budget = 56 << 20          # 128 MiB physical VMEM: big byte-targeted chunks
        vmem_cap = 100 << 20
    else:                            # v7x (64 MiB physical VMEM) and unknown chips
        x_budget = 24 << 20
        vmem_cap = 48 << 20

    # ---- flatten (B, C) -> rows; optionally fold part of HW into rows so the
    #      8-wide sublane axis is full even for tiny B*C. Reshapes are
    #      contiguous => free (no HBM copy, unlike the old jnp.pad). ----
    fold = 1
    if R < 64:
        for cand in (16, 8, 4, 2):
            if HW % cand == 0 and HW // cand >= 128 and R * cand <= 1024:
                fold = cand
                break
    R_eff = R * fold
    HW_eff = HW // fold
    x2 = x.reshape(R_eff, HW_eff)

    # ---- row tiling: full dim (always legal) or a multiple of 8 ----
    RT_CAP = 1024
    rt = R_eff if R_eff <= RT_CAP else RT_CAP
    n_r = pl.cdiv(R_eff, rt)

    # ---- HW chunking: lane-dense multiples of 128, sized to the VMEM budget,
    #      capped at 4096 lanes (<=32 unrolled lane slices in the kernel). ----
    if HW_eff < 128:
        thw = HW_eff
    else:
        max_thw = min(4096,
                      max(128, (x_budget // (2 * rt * itemsize)) // 128 * 128))
        n_chunks = pl.cdiv(HW_eff, max_thw)
        thw = min(_round_up(pl.cdiv(HW_eff, n_chunks), 128),
                  _round_up(HW_eff, 128))
    total_chunks = pl.cdiv(HW_eff, thw)
    acc_w = 128 if thw >= 128 else thw

    # ---- optional 2-way partial-sum split over HW: gives v7x's second
    #      TensorCore work even when there is only one row block. ----
    n_s = 2 if (is_v7 and n_r == 1 and total_chunks >= 2) else 1
    n_hw = pl.cdiv(total_chunks, n_s)
    need_clamp = (n_s * n_hw) > total_chunks
    needs_mask = need_clamp or (total_chunks * thw != HW_eff)

    def x_index_map(r, s, k):
        c = s * n_hw + k
        if need_clamp:
            c = jnp.minimum(c, total_chunks - 1)   # duplicate chunk, fully masked
        return (r, c)

    # ---- pipeline depth: try 3 buffers when chunks are many and VMEM allows ----
    block_bytes = rt * thw * itemsize
    buffers = 3 if (n_hw >= 3 and 3 * block_bytes <= x_budget) else 2
    x_spec_kwargs = {}
    if buffers != 2:
        x_spec_kwargs["pipeline_mode"] = pl.Buffered(buffers)

    vmem_limit = int(buffers * block_bytes      # pipelined x blocks
                     + rt * acc_w * 4           # pool accumulator scratch
                     + 2 * rt * 4               # output block
                     + (2 << 20))               # headroom
    vmem_limit = min(vmem_cap, max(16 << 20, vmem_limit))

    kernel = functools.partial(_pool_kernel, hw_true=HW_eff, thw=thw,
                               n_hw=n_hw, needs_mask=needs_mask)

    sums = pl.pallas_call(
        kernel,
        out_shape=jax.ShapeDtypeStruct((n_s, R_eff, 1), jnp.float32),
        grid_spec=pltpu.PrefetchScalarGridSpec(
            num_scalar_prefetch=0,
            grid=(n_r, n_s, n_hw),
            in_specs=[pl.BlockSpec((rt, thw), x_index_map, **x_spec_kwargs)],
            out_specs=pl.BlockSpec((1, rt, 1), lambda r, s, k: (s, r, 0)),
            scratch_shapes=[pltpu.VMEM((rt, acc_w), jnp.float32)],
        ),
        compiler_params=pltpu.CompilerParams(
            dimension_semantics=("parallel", "parallel", "arbitrary"),
            vmem_limit_bytes=vmem_limit,
        ),
    )(x2)

    # ---- tiny epilogue (runs once per forward; negligible next to the
    #      HBM-bound pooling stream, per the review): fc with BN folded in,
    #      ReLU, four fused 1x1 heads with sigmoid / softmax. ----
    pooled = (sums.sum(axis=0)[:, 0]
              .reshape(B, C, fold).sum(axis=-1)) * (1.0 / HW)              # (B, C)
    h = jnp.maximum(pooled @ prep["fc_w"] + prep["fc_b"], 0.0)             # (B, A)
    logits = h @ prep["head_w"] + prep["head_b"]                           # (B, TOT)

    KK = kernel_size * kernel_size
    c0 = in_planes
    c1 = c0 + out_planes
    c2 = c1 + KK
    ch = jax.nn.sigmoid(logits[:, :c0]).reshape(B, in_planes, 1, 1)
    fi = jax.nn.sigmoid(logits[:, c0:c1]).reshape(B, out_planes, 1, 1)
    sp = jax.nn.sigmoid(logits[:, c1:c2]).reshape(B, 1, 1, 1,
                                                  kernel_size, kernel_size)
    kn = jax.nn.softmax(logits[:, c2:], axis=-1).reshape(B, kernel_num, 1, 1, 1, 1)
    return ch, fi, sp, kn


def _reference(x, p):
    """Pure-JAX reference of the same forward pass for verification."""
    eps = 1e-5
    pooled = jnp.mean(x.astype(jnp.float32), axis=(2, 3))                  # (B, C)
    h = pooled @ p["fc_w"].T
    h = (h - p["bn_mean"]) / jnp.sqrt(p["bn_var"] + eps) * p["bn_gamma"] + p["bn_beta"]
    h = jnp.maximum(h, 0.0)
    ch = jax.nn.sigmoid(h @ p["channel_w"].T + p["channel_b"])
    fi = jax.nn.sigmoid(h @ p["filter_w"].T + p["filter_b"])
    sp = jax.nn.sigmoid(h @ p["spatial_w"].T + p["spatial_b"])
    kn = jax.nn.softmax(h @ p["kernel_w"].T + p["kernel_b"], axis=-1)
    return ch, fi, sp, kn


if __name__ == "__main__":
    # Small config: in_planes=4, out_planes=8, kernel_size=3, kernel_num=4
    # -> attention_channel = max(int(4*0.0625), 16) = 16
    B, C_in, H, W = 2, 4, 16, 16
    C_out, K, KN = 8, 3, 4

    key = jax.random.PRNGKey(0)
    kx, kp = jax.random.split(key)
    x = jax.random.normal(kx, (B, C_in, H, W), dtype=jnp.float32)
    params = init_attention_params(kp, C_in, C_out, K, kernel_num=KN)
    prep = prepare_attention_kernel_params(params)   # one-time BN fold + head fuse

    outs = odconv_attention(x, prep, C_in, C_out, K, KN)
    outs = jax.block_until_ready(outs)

    ch, fi, sp, kn = outs
    assert ch.shape == (B, C_in, 1, 1)
    assert fi.shape == (B, C_out, 1, 1)
    assert sp.shape == (B, 1, 1, 1, K, K)
    assert kn.shape == (B, KN, 1, 1, 1, 1)

    rch, rfi, rsp, rkn = _reference(x, params)
    assert jnp.allclose(ch.reshape(B, -1), rch, atol=1e-4)
    assert jnp.allclose(fi.reshape(B, -1), rfi, atol=1e-4)
    assert jnp.allclose(sp.reshape(B, -1), rsp, atol=1e-4)
    assert jnp.allclose(kn.reshape(B, -1), rkn, atol=1e-4)

    print("KERNEL_OK")
</pallas_src>

<mosaic_0001>
module attributes {stable_mosaic.version = 11 : i64} {
  func.func @_pool_kernel(%arg0: i32, %arg1: i32, %arg2: i32, %arg3: memref<16x128xf32, #tpu.memory_space<vmem>>, %arg4: memref<1x16x1xf32, #tpu.memory_space<vmem>>, %arg5: memref<16x128xf32, #tpu.memory_space<vmem>>) attributes {dimension_semantics = [#tpu.dimension_semantics<parallel>, #tpu.dimension_semantics<parallel>, #tpu.dimension_semantics<arbitrary>], iteration_bounds = array<i64: 1, 1, 1>, scalar_prefetch = 0 : i64, scratch_operands = 1 : i64, tpu.core_type = #tpu.core_type<tc>, window_params = [{transform_indices = @transform_0, window_bounds = array<i64: 16, 128>}, {transform_indices = @transform_1, window_bounds = array<i64: 1, 16, 1>}]} {
    %c0_i32 = arith.constant 0 : i32
    %0 = arith.cmpi eq, %arg2, %c0_i32 : i32
    %1 = arith.extui %0 : i1 to i32
    %c0_i32_0 = arith.constant 0 : i32
    %2 = arith.cmpi ne, %1, %c0_i32_0 : i32
    scf.if %2 {
      %cst_8 = arith.constant 0.000000e+00 : f32
      %12 = vector.broadcast %cst_8 : f32 to vector<16x128xf32>
      %c0_9 = arith.constant 0 : index
      %c0_10 = arith.constant 0 : index
      %13 = vector.load %arg5[%c0_9, %c0_10] : memref<16x128xf32, #tpu.memory_space<vmem>>, vector<16x128xf32>
      tpu.vector_store %arg5[%c0_9, %c0_10], %12 {strides = array<i32>} : memref<16x128xf32, #tpu.memory_space<vmem>>, vector<16x128xf32>,
    } else {
    }
    %cst = arith.constant 0.000000e+00 : f32
    %3 = vector.broadcast %cst : f32 to vector<16x128xf32>
    %c0 = arith.constant 0 : index
    %c0_1 = arith.constant 0 : index
    %4 = vector.load %arg3[%c0, %c0_1] : memref<16x128xf32, #tpu.memory_space<vmem>>, vector<16x128xf32>
    %5 = arith.addf %3, %4 : vector<16x128xf32>
    %c0_2 = arith.constant 0 : index
    %c0_3 = arith.constant 0 : index
    %6 = vector.load %arg5[%c0_2, %c0_3] : memref<16x128xf32, #tpu.memory_space<vmem>>, vector<16x128xf32>
    %7 = arith.addf %6, %5 : vector<16x128xf32>
    %c0_4 = arith.constant 0 : index
    %c0_5 = arith.constant 0 : index
    %8 = vector.load %arg5[%c0_4, %c0_5] : memref<16x128xf32, #tpu.memory_space<vmem>>, vector<16x128xf32>
    tpu.vector_store %arg5[%c0_4, %c0_5], %7 {strides = array<i32>} : memref<16x128xf32, #tpu.memory_space<vmem>>, vector<16x128xf32>,
    %c0_i32_6 = arith.constant 0 : i32
    %9 = arith.cmpi eq, %arg2, %c0_i32_6 : i32
    %10 = arith.extui %9 : i1 to i32
    %c0_i32_7 = arith.constant 0 : i32
    %11 = arith.cmpi ne, %10, %c0_i32_7 : i32
    scf.if %11 {
      %c0_8 = arith.constant 0 : index
      %c0_9 = arith.constant 0 : index
      %12 = vector.load %arg5[%c0_8, %c0_9] : memref<16x128xf32, #tpu.memory_space<vmem>>, vector<16x128xf32>
      %cst_10 = arith.constant dense<0.000000e+00> : vector<16xf32>
      %13 = vector.multi_reduction <add>, %12, %cst_10 [1] : vector<16x128xf32> to vector<16xf32>
      %14 = vector.shape_cast %13 : vector<16xf32> to vector<16x1xf32>
      %15 = vector.shape_cast %14 : vector<16x1xf32> to vector<1x16x1xf32>
      %c0_11 = arith.constant 0 : index
      %c0_12 = arith.constant 0 : index
      %c0_13 = arith.constant 0 : index
      %16 = vector.load %arg4[%c0_11, %c0_12, %c0_13] : memref<1x16x1xf32, #tpu.memory_space<vmem>>, vector<1x16x1xf32>
      tpu.vector_store %arg4[%c0_11, %c0_12, %c0_13], %15 {strides = array<i32>} : memref<1x16x1xf32, #tpu.memory_space<vmem>>, vector<1x16x1xf32>,
    } else {
    }
    return
  }
  func.func @transform_0(%arg0: i32, %arg1: i32, %arg2: i32) -> (i32, i32) {
    %c1_i32 = arith.constant 1 : i32
    %0 = arith.muli %arg1, %c1_i32 : i32
    %1 = arith.addi %0, %arg2 : i32
    %c0_i32 = arith.constant 0 : i32
    return %arg0, %1 : i32, i32
  }
  func.func @transform_1(%arg0: i32, %arg1: i32, %arg2: i32) -> (i32, i32, i32) {
    %c0_i32 = arith.constant 0 : i32
    %c0_i32_0 = arith.constant 0 : i32
    return %arg1, %arg0, %c0_i32 : i32, i32, i32
  }
}

</mosaic_0001>

<llo_original>
// kernel: tpu_custom_call.1
$region0: #{tpu_custom_call.1}
  #allocation0 [shape = 'u32[]', space=smem, size = 0x4, offset = 0x4, fixed_abs, tag = 'smem constant byte address 0x4 - core index']
  #allocation1 [shape = 'u32[144,128]{1,0:T(1,128)}', space=vmem, size = 0x12000, scoped, tag = 'internal scratch']
  #allocation2 [shape = 'f32[16,128]{1,0:T(8,128)}', space=vmem, size = 0x2000, scoped, tag = 'scratch operand']
  %s0 = inlined_call_operand.hbm [shape: f32[16,128], index: 0, kind: input, shape index: {}]
  %s1 = inlined_call_operand.vmem [shape: f32[1,16,1], index: 1, kind: output, shape index: {}]
  %s2 = sld [smem:[#allocation0]]
  $region26: #{tpu_custom_call.1} parent=0
    _
  %s4 = ssub.s32 1, %s2
  %s5 = scalar_select 0, %s4, %s2
  $region1: #{tpu_custom_call.1} parent=0
    #allocation3 [shape = 'u8[8192]{0}', space=vmem, size = 0x2000, scoped, tag = 'input window, operand 0, single buffered']
    #allocation4 [shape = 's32[1]{0}', space=sflag, size = 0x4, scoped, tag = 'scoped memory for tpu_custom_call.1']
    %6 = vsyncpa [#allocation4], 0
    // Predicated region
    $region2: #{tpu_custom_call.1} parent=1 // pred_check
      _
    $region3: #{tpu_custom_call.1} parent=1 // pred_check_branch
      %8 = sbr.rel (0) target = $region5
    $region4: #{tpu_custom_call.1} parent=1 // pred_region
      %s9 = sadd.s32 0, 0
      %s11 = ssub.s32 256, 256
      %12 = vsyncadd [#allocation4], %s11
      %s13 = smul.addr %s9, 128
      %s14 = scalar_lea.hbm %s0, %s13
      %s15 = sshll.u32 [#allocation3], 4
      %s16 = int_to_ptr.vmem [resolvable:$true] %s15
      %21 = dma.hbm_to_vmem [thread:$0]  %s14, 256, %s16, [#allocation4], 128, 128, 8
    $region5: #{tpu_custom_call.1} parent=1 // pred_fallthru
      _
    // Predicated region
    $region6: #{tpu_custom_call.1} parent=1 // pred_check
      _
    $region7: #{tpu_custom_call.1} parent=1 // pred_check_branch
      %23 = sbr.rel (0) target = $region9
    $region8: #{tpu_custom_call.1} parent=1 // pred_region
      %24 = dma.done [#allocation4], 256
    $region9: #{tpu_custom_call.1} parent=1 // pred_fallthru
      _
    %s25 = sadd.s32 0, 0
    %p26 = scmp.eq.s32.totalorder 0, 0
    // Predicated region
    $region10: #{tpu_custom_call.1} parent=1 // pred_check
      %p27 = pneg %p26
    $region11: #{tpu_custom_call.1} parent=1 // pred_check_branch
      %29 = sbr.rel (%p27) target = $region13
    $region12: #{tpu_custom_call.1} parent=1 // pred_region
      %30 = vst [vmem:[#allocation2] sm:$0xff] 0.0
      %31 = vst [vmem:[#allocation2 + $0x8] sm:$0xff] 0.0
    $region13: #{tpu_custom_call.1} parent=1 // pred_fallthru
      _
    %v32 = vld [vmem:[#allocation3] sm:$0xff]
    %v33 = vld [vmem:[#allocation3 + $0x8] sm:$0xff]
    %v34 = vadd.f32 %v32, 0.0
    %v35 = vadd.f32 %v33, 0.0
    %v36 = vld [vmem:[#allocation2] sm:$0xff]
    %v37 = vld [vmem:[#allocation2 + $0x8] sm:$0xff]
    %v38 = vadd.f32 %v36, %v34
    %v39 = vadd.f32 %v37, %v35
    %40 = vst [vmem:[#allocation2] sm:$0xff] %v38
    %41 = vst [vmem:[#allocation2 + $0x8] sm:$0xff] %v39
    // Predicated region
    $region14: #{tpu_custom_call.1} parent=1 // pred_check
      %p42 = pneg %p26
    $region15: #{tpu_custom_call.1} parent=1 // pred_check_branch
      %44 = sbr.rel (%p42) target = $region17
    $region16: #{tpu_custom_call.1} parent=1 // pred_region
      %v45 = vld [vmem:[#allocation2] sm:$0xff]
      %v46 = vld [vmem:[#allocation2 + $0x8] sm:$0xff]
      %47 = vadd.xlane.f32.xlu0 %v45
      %v48 = vpop.xlane.xlu0 %47
      %49 = vadd.xlane.f32.xlu0 %v46
      %v50 = vpop.xlane.xlu0 %49
      %vm51 = vcmask 7168
      %52 = vst.msk [vmem:[%s1] sm:$0xff] %vm51, %v48
      %53 = vst.msk [vmem:[%s1 + $0x8] sm:$0xff] %vm51, %v50
    $region17: #{tpu_custom_call.1} parent=1 // pred_fallthru
      _
    // Predicated region
    $region18: #{tpu_custom_call.1} parent=1 // pred_check
      _
    $region19: #{tpu_custom_call.1} parent=1 // pred_check_branch
      %55 = sbr.rel (0) target = $region21
    $region20: #{tpu_custom_call.1} parent=1 // pred_region
      _
    $region21: #{tpu_custom_call.1} parent=1 // pred_fallthru
      _
    // Predicated region
    $region22: #{tpu_custom_call.1} parent=1 // pred_check
      _
    $region23: #{tpu_custom_call.1} parent=1 // pred_check_branch
      %57 = sbr.rel (0) target = $region25
    $region24: #{tpu_custom_call.1} parent=1 // pred_region
      _
    $region25: #{tpu_custom_call.1} parent=1 // pred_fallthru
      _
    %58 = vsyncpa [#allocation4], 1

</llo_original>
